<compile_context>
chip_gen: v7x
topology: tpu7x:2x2x1
jax: 0.10.0
libtpu: 0.0.40
codegen_flags: <defaults>
</compile_context>

<pallas_src>
import jax
import jax.numpy as jnp
from jax.experimental import pallas as pl
from jax.experimental.pallas import tpu as pltpu


def _round_up(x, m):
    return (x + m - 1) // m * m


def _sigmoid_from_half_z(half_z):
    # sigmoid(z) == 0.5 * tanh(z / 2) + 0.5.  The caller supplies z/2 directly
    # (0.5*alpha is folded into the weights), so this is exactly one EUP tanh
    # plus one VPU fma per element, and it saturates cleanly for large |z|.
    return 0.5 * jnp.tanh(half_z) + 0.5


def mlp_forward_kernel(x_ref, wih_ref, who_ref, o_ref):
    """One batch tile of the fused 2-layer MLP.

    x_ref:   (TB, In)     float32 activations, streamed per grid step
    wih_ref: (In, H_p)    compute dtype, 0.5*alpha folded in, VMEM-resident
    who_ref: (H_p, Out_p) compute dtype, 0.5*alpha folded in, VMEM-resident
    o_ref:   (TB, Out_p)  compute dtype, lane-dense (Out_p multiple of 128)
    """
    cd = wih_ref.dtype
    # In-kernel cast rides the VPU alongside the MXU (no extra HBM pass).
    x = x_ref[...].astype(cd)
    z1 = jnp.dot(x, wih_ref[...], preferred_element_type=jnp.float32)
    h = _sigmoid_from_half_z(z1)            # f32 activation math (safe on v5e)
    z3 = jnp.dot(h.astype(cd), who_ref[...], preferred_element_type=jnp.float32)
    o_ref[...] = _sigmoid_from_half_z(z3).astype(o_ref.dtype)


def _vmem_capacity_bytes():
    try:
        return int(pltpu.get_tpu_info().vmem_capacity_bytes)
    except Exception:
        return 64 * 1024 * 1024   # conservative fallback: v7x per-core VMEM


def mlp_forward(x, wih_k, who_k, *, out_dim, block_batch=512):
    """Fused MLP forward.

    x:      (B, In) float32 activations (unpadded, un-copied).
    wih_k:  (In, H_p)   0.5*alpha-folded, lane-padded, compute-dtype weights.
    who_k:  (H_p, Out_p) 0.5*alpha-folded, lane-padded, compute-dtype weights.
    Returns (B, out_dim) float32.
    """
    B, In = x.shape
    In_w, H_p = wih_k.shape
    H_p2, Out_p = who_k.shape
    assert In_w == In and H_p == H_p2
    cd = wih_k.dtype
    w_itm = jnp.dtype(cd).itemsize

    # ---- batch tile selection: minimise padding waste ----------------------
    # Target tile count from block_batch, bumped to an even count (>=2) so a
    # 2-TensorCore part (v7x) splits the "parallel" batch axis evenly; the one
    # extra grid step costs ~0.35 us on single-core parts.
    n_t = max(1, pl.cdiv(B, block_batch))
    if B >= 32 and n_t % 2 == 1:
        n_t += 1
    TB = _round_up(pl.cdiv(B, n_t), 16)     # 16: covers f32 & bf16 sublane packing

    # ---- generation-aware VMEM budget --------------------------------------
    cap = _vmem_capacity_bytes()
    budget = int(0.7 * cap)
    resident_w = 2 * (In * H_p + H_p * Out_p) * w_itm   # default double-buffering

    def footprint(tb):
        return (resident_w
                + 2 * tb * In * 4            # streamed X tiles (f32, 2 buffers)
                + 2 * tb * Out_p * w_itm     # streamed output tiles (2 buffers)
                + 3 * tb * H_p * 4)          # f32 intermediates / headroom

    while TB > 16 and footprint(TB) > budget:
        TB = _round_up(TB // 2, 16)
    # NOTE: if the weights themselves outgrow VMEM, a K/N-tiled grid with a
    # VMEM f32 accumulator (pl.when init/finalize) would be needed; not
    # required at these sizes on any generation.

    n_tiles = pl.cdiv(B, TB)                 # Pallas masks the ragged last tile

    need = footprint(TB)
    vmem_limit = int(min(max(2 * need, 32 * 1024 * 1024), budget))
    vmem_limit = max(vmem_limit, need + (1 << 20))   # never below the footprint
    vmem_limit = min(vmem_limit, cap)

    flops = 2 * n_tiles * TB * (In * H_p + H_p * Out_p)
    transcendentals = n_tiles * TB * (H_p + Out_p)    # one tanh per activation
    bytes_accessed = (B * In * 4
                      + (In * H_p + H_p * Out_p) * w_itm
                      + B * Out_p * w_itm)

    out_p = pl.pallas_call(
        mlp_forward_kernel,
        out_shape=jax.ShapeDtypeStruct((B, Out_p), cd),
        grid=(n_tiles,),
        in_specs=[
            pl.BlockSpec((TB, In), lambda i: (i, 0)),      # X: streamed, f32
            pl.BlockSpec((In, H_p), lambda i: (0, 0)),     # WIH: VMEM-resident
            pl.BlockSpec((H_p, Out_p), lambda i: (0, 0)),  # WHO: VMEM-resident
        ],
        out_specs=pl.BlockSpec((TB, Out_p), lambda i: (i, 0)),
        compiler_params=pltpu.CompilerParams(
            dimension_semantics=("parallel",),     # megacore: split batch tiles
            vmem_limit_bytes=vmem_limit),
        cost_estimate=pl.CostEstimate(flops=flops,
                                      transcendentals=transcendentals,
                                      bytes_accessed=bytes_accessed),
    )(x, wih_k, who_k)

    # Slice away lane padding; upcast once (bf16 path) to match the module's
    # float32 return.
    return out_p[:, :out_dim].astype(jnp.float32)


class MultiLayerPerceptronTPU:
    """JAX/Pallas port of MultiLayerPerceptron_gpu (forward pass only).

    compute_dtype=bfloat16 (default) feeds the MXU its native dtype with f32
    accumulation — the fast path on v5e/v6e/v7x.  Pass compute_dtype=float32
    for full-precision matmuls (multi-pass MXU, slower).
    """

    def __init__(self, input_dim, hidden_dim, output_dim, learning_rate, alpha,
                 key=jax.random.PRNGKey(0), compute_dtype=jnp.bfloat16,
                 block_batch=512):
        self.input_dim = input_dim
        self.hidden_dim = hidden_dim
        self.output_dim = output_dim
        self.learning_rate = jnp.float32(learning_rate)
        self.alpha = jnp.float32(alpha)
        self.block_batch = block_batch

        k1, k2 = jax.random.split(key)
        # torch.randn equivalent: standard normal, deterministic via PRNGKey.
        self.WIH = jax.random.normal(k1, (input_dim, hidden_dim), jnp.float32)
        self.WHO = jax.random.normal(k2, (hidden_dim, output_dim), jnp.float32)

        # One-time kernel-facing weight prep (free at run time):
        #  1) fold 0.5*alpha:  sigmoid(alpha*(X@W)) == 0.5*tanh(X@(0.5*alpha*W))+0.5
        #  2) zero-pad the lane dims (hidden, output) to multiples of 128 so
        #     intermediate/output tiles are lane-dense; padding contributes
        #     exactly zero to the real outputs (padded WHO rows are zero).
        #     The input dim is NOT padded — the kernel uses a full-extent block
        #     so X never needs a wrapper-side copy.
        #  3) cast to the MXU compute dtype.
        h_p = _round_up(hidden_dim, 128)
        out_p = _round_up(output_dim, 128)
        scale = 0.5 * self.alpha
        wih_s = (scale * self.WIH).astype(compute_dtype)
        who_s = (scale * self.WHO).astype(compute_dtype)
        self._wih_k = (jnp.zeros((input_dim, h_p), compute_dtype)
                       .at[:, :hidden_dim].set(wih_s))
        self._who_k = (jnp.zeros((h_p, out_p), compute_dtype)
                       .at[:hidden_dim, :output_dim].set(who_s))

        self._fwd = jax.jit(mlp_forward,
                            static_argnames=("out_dim", "block_batch"))

    def forward(self, X):
        return self._fwd(X, self._wih_k, self._who_k,
                         out_dim=self.output_dim, block_batch=self.block_batch)

    # TODO(synk): backward()/train() (weight updates) intentionally not ported;
    # only the forward pass is implemented as a Pallas kernel per the task.


def _forward_ref_exact(x, wih, who, alpha):
    """Pure-JAX reference matching the PyTorch module exactly (f32)."""
    hi = jax.lax.Precision.HIGHEST
    sig = lambda z: 1.0 / (1.0 + jnp.exp(-alpha * z))
    y2 = sig(jnp.matmul(x, wih, precision=hi))
    return sig(jnp.matmul(y2, who, precision=hi))


def _forward_ref_compute_dtype(x, wih, who, alpha, compute_dtype):
    """Reference with the same alpha-fold + low-precision MXU inputs as the kernel."""
    wih_s = (jnp.float32(alpha) * wih).astype(compute_dtype)
    who_s = (jnp.float32(alpha) * who).astype(compute_dtype)
    sig = lambda z: 1.0 / (1.0 + jnp.exp(-z))
    y2 = sig(jnp.dot(x.astype(compute_dtype), wih_s,
                     preferred_element_type=jnp.float32))
    return sig(jnp.dot(y2.astype(compute_dtype), who_s,
                       preferred_element_type=jnp.float32))


if __name__ == "__main__":
    # Small, deliberately non-aligned shapes: exercises the ragged batch tile,
    # the unpadded-In full-extent block, and the lane padding of hidden/output.
    batch, input_dim, hidden_dim, output_dim = 300, 48, 96, 10
    learning_rate, alpha = 0.01, 1.5

    key = jax.random.PRNGKey(0)
    k_x, k_model = jax.random.split(key)
    X = jax.random.normal(k_x, (batch, input_dim), dtype=jnp.float32)

    # --- default bf16 MXU path (fast path on v5e / v6e / v7x) ---------------
    model_bf16 = MultiLayerPerceptronTPU(input_dim, hidden_dim, output_dim,
                                         learning_rate, alpha, key=k_model,
                                         compute_dtype=jnp.bfloat16)
    out_bf16 = jax.block_until_ready(model_bf16.forward(X))
    assert out_bf16.shape == (batch, output_dim)
    ref_bf16 = _forward_ref_compute_dtype(X, model_bf16.WIH, model_bf16.WHO,
                                          alpha, jnp.bfloat16)
    # Differences vs the matched reference: bf16 output store, tanh-form
    # sigmoid, MXU vs XLA accumulation order.  All well under 2e-2.
    assert jnp.allclose(out_bf16, ref_bf16, atol=2e-2, rtol=2e-2), \
        "bf16 path mismatch vs reference"

    # --- f32 path (full precision), checked vs the exact module math --------
    model_f32 = MultiLayerPerceptronTPU(input_dim, hidden_dim, output_dim,
                                        learning_rate, alpha, key=k_model,
                                        compute_dtype=jnp.float32)
    out_f32 = jax.block_until_ready(model_f32.forward(X))
    assert out_f32.shape == (batch, output_dim)
    ref_f32 = _forward_ref_exact(X, model_f32.WIH, model_f32.WHO, alpha)
    # No approximate reciprocal anymore; remaining error is the hardware tanh
    # approximation + f32 MXU pass structure, far below this tolerance.
    assert jnp.allclose(out_f32, ref_f32, atol=5e-3, rtol=5e-3), \
        "f32 path mismatch vs reference"

    print("KERNEL_OK")
</pallas_src>

<mosaic_0001>
module attributes {stable_mosaic.version = 11 : i64} {
  func.func @mlp_forward_kernel(%arg0: i32, %arg1: memref<160x48xf32, #tpu.memory_space<vmem>>, %arg2: memref<48x128xbf16, #tpu.memory_space<vmem>>, %arg3: memref<128x128xbf16, #tpu.memory_space<vmem>>, %arg4: memref<160x128xbf16, #tpu.memory_space<vmem>>) attributes {dimension_semantics = [#tpu.dimension_semantics<parallel>], iteration_bounds = array<i64: 2>, scalar_prefetch = 0 : i64, scratch_operands = 0 : i64, tpu.core_type = #tpu.core_type<tc>, window_params = [{transform_indices = @transform_0, window_bounds = array<i64: 160, 48>}, {pipeline_mode = #tpu.pipeline_mode<synchronous>, transform_indices = @transform_1, window_bounds = array<i64: 48, 128>}, {pipeline_mode = #tpu.pipeline_mode<synchronous>, transform_indices = @transform_2, window_bounds = array<i64: 128, 128>}, {transform_indices = @transform_3, window_bounds = array<i64: 160, 128>}]} {
    %c0 = arith.constant 0 : index
    %c0_0 = arith.constant 0 : index
    %0 = vector.load %arg1[%c0, %c0_0] : memref<160x48xf32, #tpu.memory_space<vmem>>, vector<160x48xf32>
    %1 = arith.truncf %0 : vector<160x48xf32> to vector<160x48xbf16>
    %c0_1 = arith.constant 0 : index
    %c0_2 = arith.constant 0 : index
    %2 = vector.load %arg2[%c0_1, %c0_2] : memref<48x128xbf16, #tpu.memory_space<vmem>>, vector<48x128xbf16>
    %cst = arith.constant dense<0.000000e+00> : vector<160x128xf32>
    %3 = tpu.matmul %1, %2, %cst {dimension_numbers = #tpu.dot_dimension_numbers<[1], [0], [0], [1], [0, 0, 1, 1], [], []>} : vector<160x48xbf16>, vector<48x128xbf16>, vector<160x128xf32> -> vector<160x128xf32>
    %4 = math.tanh %3 : vector<160x128xf32>
    %cst_3 = arith.constant 5.000000e-01 : f32
    %5 = vector.broadcast %cst_3 : f32 to vector<160x128xf32>
    %6 = arith.mulf %5, %4 : vector<160x128xf32>
    %cst_4 = arith.constant 5.000000e-01 : f32
    %7 = vector.broadcast %cst_4 : f32 to vector<160x128xf32>
    %8 = arith.addf %6, %7 : vector<160x128xf32>
    %9 = arith.truncf %8 : vector<160x128xf32> to vector<160x128xbf16>
    %c0_5 = arith.constant 0 : index
    %c0_6 = arith.constant 0 : index
    %10 = vector.load %arg3[%c0_5, %c0_6] : memref<128x128xbf16, #tpu.memory_space<vmem>>, vector<128x128xbf16>
    %cst_7 = arith.constant dense<0.000000e+00> : vector<160x128xf32>
    %11 = tpu.matmul %9, %10, %cst_7 {dimension_numbers = #tpu.dot_dimension_numbers<[1], [0], [0], [1], [0, 0, 1, 1], [], []>} : vector<160x128xbf16>, vector<128x128xbf16>, vector<160x128xf32> -> vector<160x128xf32>
    %12 = math.tanh %11 : vector<160x128xf32>
    %cst_8 = arith.constant 5.000000e-01 : f32
    %13 = vector.broadcast %cst_8 : f32 to vector<160x128xf32>
    %14 = arith.mulf %13, %12 : vector<160x128xf32>
    %cst_9 = arith.constant 5.000000e-01 : f32
    %15 = vector.broadcast %cst_9 : f32 to vector<160x128xf32>
    %16 = arith.addf %14, %15 : vector<160x128xf32>
    %17 = arith.truncf %16 : vector<160x128xf32> to vector<160x128xbf16>
    %c0_10 = arith.constant 0 : index
    %c0_11 = arith.constant 0 : index
    %18 = vector.load %arg4[%c0_10, %c0_11] : memref<160x128xbf16, #tpu.memory_space<vmem>>, vector<160x128xbf16>
    tpu.vector_store %arg4[%c0_10, %c0_11], %17 {strides = array<i32>} : memref<160x128xbf16, #tpu.memory_space<vmem>>, vector<160x128xbf16>,
    return
  }
  func.func @transform_0(%arg0: i32) -> (i32, i32) {
    %c0_i32 = arith.constant 0 : i32
    %c0_i32_0 = arith.constant 0 : i32
    return %arg0, %c0_i32 : i32, i32
  }
  func.func @transform_1(%arg0: i32) -> (i32, i32) {
    %c0_i32 = arith.constant 0 : i32
    %c0_i32_0 = arith.constant 0 : i32
    %c0_i32_1 = arith.constant 0 : i32
    return %c0_i32, %c0_i32_0 : i32, i32
  }
  func.func @transform_2(%arg0: i32) -> (i32, i32) {
    %c0_i32 = arith.constant 0 : i32
    %c0_i32_0 = arith.constant 0 : i32
    %c0_i32_1 = arith.constant 0 : i32
    return %c0_i32, %c0_i32_0 : i32, i32
  }
  func.func @transform_3(%arg0: i32) -> (i32, i32) {
    %c0_i32 = arith.constant 0 : i32
    %c0_i32_0 = arith.constant 0 : i32
    return %arg0, %c0_i32 : i32, i32
  }
}

</mosaic_0001>

<llo_original>
// kernel: mlp_forward.1
$region0: #{mlp_forward.1}
  #allocation0 [shape = 'u32[]', space=smem, size = 0x4, offset = 0x4, fixed_abs, tag = 'smem constant byte address 0x4 - core index']
  #allocation1 [shape = 'u32[144,128]{1,0:T(1,128)}', space=vmem, size = 0x12000, scoped, tag = 'internal scratch']
  %s0 = inlined_call_operand.vmem [shape: f32[300,48], index: 0, kind: input, shape index: {}]
  %s1 = inlined_call_operand.vmem [shape: bf16[48,128], index: 1, kind: input, shape index: {}]
  %s2 = inlined_call_operand.vmem [shape: bf16[128,128], index: 2, kind: input, shape index: {}]
  %s3 = inlined_call_operand.vmem [shape: bf16[300,128], index: 3, kind: output, shape index: {}]
  %s4 = sld [smem:[#allocation0]]
  $region89: #{mlp_forward.1} parent=0
    _
  %s6 = ssub.s32 1, %s4
  %s7 = scalar_select 0, %s6, %s4
  $region1: #{mlp_forward.1} parent=0
    #allocation2 [shape = 'u8[81920]{0}', space=vmem, size = 0x14000, scoped, tag = 'output window, operand 0']
    loop: start=0, step=1, limit=4
    $region2: #{mlp_forward.1} parent=1 // loop_pre_header
      _
    $region3: #{mlp_forward.1} parent=1 // loop_header
      %s9 = sphi 0, %s13
      %p10 = scmp.ge.s32.totalorder %s9, 4
      %s19 = sphi 0, %s21
      %s22 = sphi 0, %s19
      %s23 = sphi 0, %s22
      %s39 = sphi 0, %s23
      %s43 = sphi 0, %s43
      %s45 = sphi 0, %s43
      %s46 = sphi 0, %s45
      %s60 = sphi 0, %s46
      %s64 = sphi 0, %s64
      %s66 = sphi 0, %s64
      %s67 = sphi 0, %s66
      %s81 = sphi 0, %s67
      %s87 = sphi 0, %s89
      %s90 = sphi 0, %s87
      %s91 = sphi 0, %s90
      %s107 = sphi 0, %s91
    $region4: #{mlp_forward.1} parent=1 // loop_header_branch
      %12 = sbr.rel (%p10) target = $region8
    $region5: #{mlp_forward.1} parent=1 // loop_body
      %s14 = ssub.s32 %s9, 1
      %s15 = ssub.s32 %s9, 2
      %s16 = sadd.s32 %s9, 1
      %s17 = ssub.s32 %s9, %s16
      %p18 = scmp.eq.s32.totalorder %s17, 0
      %s20 = sadd.s32 %s19, 1
      %s21 = scalar_select %p18, %s19, %s20
      %p24 = pneg %p18
      %p25 = scmp.eq.s32.totalorder %s9, 1
      %p26 = por %p24, %p25
      %p27 = scmp.ne.s32.totalorder %s19, %s22
      %p28 = scmp.eq.s32.totalorder %s9, 0
      %p29 = por %p27, %p28
      %p30 = scmp.ne.s32.totalorder %s19, %s22
      %p31 = scmp.eq.s32.totalorder %s14, 1
      %p32 = por %p30, %p31
      %p33 = scmp.ne.s32.totalorder %s22, %s23
      %p34 = scmp.eq.s32.totalorder %s14, 0
      %p35 = por %p33, %p34
      %p36 = scmp.ne.s32.totalorder %s22, %s23
      %p37 = scmp.eq.s32.totalorder %s15, 1
      %p38 = por %p36, %p37
      %p40 = scmp.ne.s32.totalorder %s23, %s39
      %p41 = scmp.eq.s32.totalorder %s15, 0
      %p42 = por %p40, %p41
      %s44 = sadd.s32 %s43, 1
      %p47 = scmp.eq.s32.totalorder %s9, 1
      %p48 = scmp.ne.s32.totalorder %s43, %s45
      %p49 = scmp.eq.s32.totalorder %s9, 0
      %p50 = por %p48, %p49
      %p51 = scmp.ne.s32.totalorder %s43, %s45
      %p52 = scmp.eq.s32.totalorder %s14, 1
      %p53 = por %p51, %p52
      %p54 = scmp.ne.s32.totalorder %s45, %s46
      %p55 = scmp.eq.s32.totalorder %s14, 0
      %p56 = por %p54, %p55
      %p57 = scmp.ne.s32.totalorder %s45, %s46
      %p58 = scmp.eq.s32.totalorder %s15, 1
      %p59 = por %p57, %p58
      %p61 = scmp.ne.s32.totalorder %s46, %s60
      %p62 = scmp.eq.s32.totalorder %s15, 0
      %p63 = por %p61, %p62
      %s65 = sadd.s32 %s64, 1
      %p68 = scmp.eq.s32.totalorder %s9, 1
      %p69 = scmp.ne.s32.totalorder %s64, %s66
      %p70 = scmp.eq.s32.totalorder %s9, 0
      %p71 = por %p69, %p70
      %p72 = scmp.ne.s32.totalorder %s64, %s66
      %p73 = scmp.eq.s32.totalorder %s14, 1
      %p74 = por %p72, %p73
      %p75 = scmp.ne.s32.totalorder %s66, %s67
      %p76 = scmp.eq.s32.totalorder %s14, 0
      %p77 = por %p75, %p76
      %p78 = scmp.ne.s32.totalorder %s66, %s67
      %p79 = scmp.eq.s32.totalorder %s15, 1
      %p80 = por %p78, %p79
      %p82 = scmp.ne.s32.totalorder %s67, %s81
      %p83 = scmp.eq.s32.totalorder %s15, 0
      %p84 = por %p82, %p83
      %s85 = ssub.s32 %s9, %s16
      %p86 = scmp.eq.s32.totalorder %s85, 0
      %s88 = sadd.s32 %s87, 1
      %s89 = scalar_select %p86, %s87, %s88
      %p92 = pneg %p86
      %p93 = scmp.eq.s32.totalorder %s9, 1
      %p94 = por %p92, %p93
      %p95 = scmp.ne.s32.totalorder %s87, %s90
      %p96 = scmp.eq.s32.totalorder %s9, 0
      %p97 = por %p95, %p96
      %p98 = scmp.ne.s32.totalorder %s87, %s90
      %p99 = scmp.eq.s32.totalorder %s14, 1
      %p100 = por %p98, %p99
      %p101 = scmp.ne.s32.totalorder %s90, %s91
      %p102 = scmp.eq.s32.totalorder %s14, 0
      %p103 = por %p101, %p102
      %p104 = scmp.ne.s32.totalorder %s90, %s91
      %p105 = scmp.eq.s32.totalorder %s15, 1
      %p106 = por %p104, %p105
      %p108 = scmp.ne.s32.totalorder %s91, %s107
      %p109 = scmp.eq.s32.totalorder %s15, 0
      %p110 = por %p108, %p109
      %p111 = scmp.le.s32.totalorder 1, %s9
      %p112 = scmp.lt.s32.totalorder %s9, 3
      %p113 = pnand %p111, %p112
      %p114 = pneg %p113
      // Predicated region
      $region9: #{mlp_forward.1} parent=5 // pred_check
        _
      $region10: #{mlp_forward.1} parent=5 // pred_check_branch
        %116 = sbr.rel (%p113) target = $region12
      $region11: #{mlp_forward.1} parent=5 // pred_region
        %s117 = ssub.s32 %s9, 1
        // Predicated region
        $region13: #{mlp_forward.1} parent=11 // pred_check
          %p118 = pneg %p56
        $region14: #{mlp_forward.1} parent=11 // pred_check_branch
          %120 = sbr.rel (%p118) target = $region16
        $region15: #{mlp_forward.1} parent=11 // pred_region
          _
        $region16: #{mlp_forward.1} parent=11 // pred_fallthru
          _
        // Predicated region
        $region17: #{mlp_forward.1} parent=11 // pred_check
          %p121 = pneg %p77
        $region18: #{mlp_forward.1} parent=11 // pred_check_branch
          %123 = sbr.rel (%p121) target = $region20
        $region19: #{mlp_forward.1} parent=11 // pred_region
          _
        $region20: #{mlp_forward.1} parent=11 // pred_fallthru
          _
      $region12: #{mlp_forward.1} parent=5 // pred_fallthru
        _
      %p124 = scmp.lt.s32.totalorder %s9, 2
      // Predicated region
      $region21: #{mlp_forward.1} parent=5 // pred_check
        %p125 = pneg %p124
      $region22: #{mlp_forward.1} parent=5 // pred_check_branch
        %127 = sbr.rel (%p125) target = $region24
      $region23: #{mlp_forward.1} parent=5 // pred_region
        // Predicated region
        $region25: #{mlp_forward.1} parent=23 // pred_check
          %p128 = pneg %p29
        $region26: #{mlp_forward.1} parent=23 // pred_check_branch
          %130 = sbr.rel (%p128) target = $region28
        $region27: #{mlp_forward.1} parent=23 // pred_region
          %s131 = smul.u32 20, %s9
          %s132 = ssub.s32 38, %s131
          %p133 = scmp.lt.s32.totalorder %s132, 20
          %s134 = scalar_select %p133, %s132, 20
          %s135 = smul.u32 128, %s134
          %p136 = scmp.lt.s32.totalorder %s131, 37
          %s137 = scalar_select %p136, %s131, 37
          %s138 = smul.addr %s137, 8
          %s139 = scalar_lea.vmem %s0, %s138
          %s140 = smul.u32 20, %s9
          %s141 = ssub.s32 38, %s140
          %p142 = scmp.lt.s32.totalorder %s141, 20
          %s143 = scalar_select %p142, %s141, 20
          %s144 = smul.u32 128, %s143
        $region28: #{mlp_forward.1} parent=23 // pred_fallthru
          _
      $region24: #{mlp_forward.1} parent=5 // pred_fallthru
        _
      %p145 = scmp.le.s32.totalorder 1, %s9
      %p146 = scmp.lt.s32.totalorder %s9, 3
      %p147 = pnand %p145, %p146
      %p148 = pneg %p147
      // Predicated region
      $region29: #{mlp_forward.1} parent=5 // pred_check
        _
      $region30: #{mlp_forward.1} parent=5 // pred_check_branch
        %150 = sbr.rel (%p147) target = $region32
      $region31: #{mlp_forward.1} parent=5 // pred_region
        %s151 = ssub.s32 %s9, 1
        %s152 = smul.u32 20, %s14
        %s153 = ssub.s32 38, %s152
        %p154 = scmp.lt.s32.totalorder %s153, 20
        %s155 = scalar_select %p154, %s153, 20
        %s156 = smul.u32 128, %s155
        %p157 = scmp.lt.s32.totalorder %s152, 37
        %s158 = scalar_select %p157, %s152, 37
        %s159 = smul.addr %s158, 8
        %s160 = scalar_lea.vmem %s0, %s159
        %p161 = pneg %p35
        %p162 = pneg %p32
        %p163 = pneg %p56
        %p164 = pneg %p53
        %p165 = pneg %p77
        %p166 = pneg %p74
        %p167 = pneg %p103
        %p168 = pneg %p100
        %s169 = sand.u32 %s90, 1
        %s170 = sand.u32 %s90, 1
        %s171 = smul.addr %s170, 80
        %s172 = scalar_lea.vmem [#allocation2], %s171
        %s173 = smul.u32 20, %s14
        %s174 = ssub.s32 38, %s173
        %p175 = scmp.lt.s32.totalorder %s174, 20
        %s176 = scalar_select %p175, %s174, 20
        %s177 = smul.u32 128, %s176
        %p178 = scmp.lt.s32.totalorder %s173, 37
        %s179 = scalar_select %p178, %s173, 37
        %s180 = smul.addr %s179, 8
        %s181 = scalar_lea.vmem %s0, %s180
        %s182 = smul.u32 20, %s14
        %s183 = ssub.s32 38, %s182
        %p184 = scmp.lt.s32.totalorder %s183, 20
        %s185 = scalar_select %p184, %s183, 20
        %s186 = smul.u32 128, %s185
        %s187 = smul.u32 20, %s14
        %s188 = ssub.s32 38, %s187
        %p189 = scmp.lt.s32.totalorder %s188, 20
        %s190 = scalar_select %p189, %s188, 20
        %s191 = smul.u32 64, %s190
        %v193 = vld [vmem:[%s181] sm:$0xff]
        %v194 = vld [vmem:[%s181 + $0x8] sm:$0xff]
        %v195 = vld [vmem:[%s181 + $0x10] sm:$0xff]
        %v196 = vld [vmem:[%s181 + $0x18] sm:$0xff]
        %v197 = vld [vmem:[%s181 + $0x20] sm:$0xff]
        %v198 = vld [vmem:[%s181 + $0x28] sm:$0xff]
        %v199 = vld [vmem:[%s181 + $0x30] sm:$0xff]
        %v200 = vld [vmem:[%s181 + $0x38] sm:$0xff]
        %v201 = vld [vmem:[%s181 + $0x40] sm:$0xff]
        %v202 = vld [vmem:[%s181 + $0x48] sm:$0xff]
        %v203 = vld [vmem:[%s181 + $0x50] sm:$0xff]
        %v204 = vld [vmem:[%s181 + $0x58] sm:$0xff]
        %v205 = vld [vmem:[%s181 + $0x60] sm:$0xff]
        %v206 = vld [vmem:[%s181 + $0x68] sm:$0xff]
        %v207 = vld [vmem:[%s181 + $0x70] sm:$0xff]
        %v208 = vld [vmem:[%s181 + $0x78] sm:$0xff]
        %v209 = vld [vmem:[%s181 + $0x80] sm:$0xff]
        %v210 = vld [vmem:[%s181 + $0x88] sm:$0xff]
        %v211 = vld [vmem:[%s181 + $0x90] sm:$0xff]
        %v212 = vld [vmem:[%s181 + $0x98] sm:$0xff]
        %v213 = vpack.c.bf16 %v194, %v193
        %v214 = vpack.c.bf16 %v196, %v195
        %v215 = vpack.c.bf16 %v198, %v197
        %v216 = vpack.c.bf16 %v200, %v199
        %v217 = vpack.c.bf16 %v202, %v201
        %v218 = vpack.c.bf16 %v204, %v203
        %v219 = vpack.c.bf16 %v206, %v205
        %v220 = vpack.c.bf16 %v208, %v207
        %v221 = vpack.c.bf16 %v210, %v209
        %v222 = vpack.c.bf16 %v212, %v211
        %v223 = vld [vmem:[%s1] sm:$0xf]
        %v224 = vld [vmem:[%s1 + $0x4] sm:$0xf]
        %v225 = vld [vmem:[%s1 + $0x8] sm:$0xf]
        %v226 = vld [vmem:[%s1 + $0xc] sm:$0xf]
        %v227 = vld [vmem:[%s1 + $0x10] sm:$0xf]
        %v228 = vld [vmem:[%s1 + $0x14] sm:$0xf]
        %v235 = vunpack.c.l.b16 %v223
        %v236 = vunpack.c.l.b16 %v224
        %v237 = vunpack.c.l.b16 %v225
        %v238 = vunpack.c.l.b16 %v226
        %v239 = vunpack.c.l.b16 %v227
        %v240 = vunpack.c.l.b16 %v228
        %v241 = vpack.c.b16 %v236, %v235
        %v242 = vpack.c.b16 %v238, %v237
        %v243 = vpack.c.b16 %v240, %v239
        %vm247 = vcmask 392192
        %v249 = vsel %vm247, %v213, 0
        %v252 = vsel %vm247, %v214, 0
        %v255 = vsel %vm247, %v215, 0
        %v258 = vsel %vm247, %v216, 0
        %v261 = vsel %vm247, %v217, 0
        %v264 = vsel %vm247, %v218, 0
        %v267 = vsel %vm247, %v219, 0
        %v270 = vsel %vm247, %v220, 0
        %v273 = vsel %vm247, %v221, 0
        %v276 = vsel %vm247, %v222, 0
        %278 = vmatprep.subr.bf16.mxu0 0
        %279 = vmatpush1.bf16.msra.mxu0 %v241
        %280 = vmatprep.subr.bf16.mxu0 0
        %281 = vmatpush1.bf16.msra.mxu0 %v242
        %282 = vmatprep.subr.bf16.mxu0 0
        %283 = vmatpush1.bf16.msra.mxu0 %v243
        %284 = vmatprep.subr.bf16.mxu0 0
        %285 = vmatpush1.bf16.msra.mxu0 0
        %286 = vmatprep.subr.bf16.mxu0 0
        %287 = vmatpush1.bf16.msra.mxu0 0
        %288 = vmatprep.subr.bf16.mxu0 0
        %289 = vmatpush1.bf16.msra.mxu0 0
        %290 = vmatprep.subr.bf16.mxu0 0
        %291 = vmatpush1.bf16.msra.mxu0 0
        %292 = vmatprep.subr.bf16.mxu0 0
        %293 = vmatpush1.bf16.msra.mxu0 0
        %294 = vmatprep.subr.bf16.mxu0 0
        %295 = vmatpush1.bf16.msra.mxu0 0
        %296 = vmatprep.subr.bf16.mxu0 0
        %297 = vmatpush1.bf16.msra.mxu0 0
        %298 = vmatprep.subr.bf16.mxu0 0
        %299 = vmatpush1.bf16.msra.mxu0 0
        %300 = vmatprep.subr.bf16.mxu0 0
        %301 = vmatpush1.bf16.msra.mxu0 0
        %302 = vmatprep.subr.bf16.mxu0 0
        %303 = vmatpush1.bf16.msra.mxu0 0
        %304 = vmatprep.subr.bf16.mxu0 0
        %305 = vmatpush1.bf16.msra.mxu0 0
        %306 = vmatprep.subr.bf16.mxu0 0
        %307 = vmatpush1.bf16.msra.mxu0 0
        %308 = vmatprep.subr.bf16.mxu0 0
        %309 = vmatpush1.bf16.msra.mxu0 0
        %310 = vmatprep.mubr.bf16.mxu0 0
        %311 = vmatmul.mubr.bf16.gmra.mrb[0].mxu0 %v249
        %v312 = vpop.f32.mrb[0].mxu0
        %v313 = vadd.f32 0.0, %v312
        %v314 = vpop.f32.mrb[0].mxu0
        %v315 = vpop.f32.mrb[0].mxu0
        %v316 = vadd.f32 0.0, %v315
        %v317 = vpop.f32.mrb[0].mxu0
        %318 = vmatprep.mubr.bf16.mxu0 0
        %319 = vmatmul.mubr.bf16.gmra.mrb[0].mxu0 %v252
        %v320 = vpop.f32.mrb[0].mxu0
        %v321 = vadd.f32 0.0, %v320
        %v322 = vpop.f32.mrb[0].mxu0
        %v323 = vpop.f32.mrb[0].mxu0
        %v324 = vadd.f32 0.0, %v323
        %v325 = vpop.f32.mrb[0].mxu0
        %326 = vmatprep.mubr.bf16.mxu0 0
        %327 = vmatmul.mubr.bf16.gmra.mrb[0].mxu0 %v255
        %v328 = vpop.f32.mrb[0].mxu0
        %v329 = vadd.f32 0.0, %v328
        %v330 = vpop.f32.mrb[0].mxu0
        %v331 = vpop.f32.mrb[0].mxu0
        %v332 = vadd.f32 0.0, %v331
        %v333 = vpop.f32.mrb[0].mxu0
        %334 = vmatprep.mubr.bf16.mxu0 0
        %335 = vmatmul.mubr.bf16.gmra.mrb[0].mxu0 %v258
        %v336 = vpop.f32.mrb[0].mxu0
        %v337 = vadd.f32 0.0, %v336
        %v338 = vpop.f32.mrb[0].mxu0
        %v339 = vpop.f32.mrb[0].mxu0
        %v340 = vadd.f32 0.0, %v339
        %v341 = vpop.f32.mrb[0].mxu0
        %342 = vmatprep.mubr.bf16.mxu0 0
        %343 = vmatmul.mubr.bf16.gmra.mrb[0].mxu0 %v261
        %v344 = vpop.f32.mrb[0].mxu0
        %v345 = vadd.f32 0.0, %v344
        %v346 = vpop.f32.mrb[0].mxu0
        %v347 = vpop.f32.mrb[0].mxu0
        %v348 = vadd.f32 0.0, %v347
        %v349 = vpop.f32.mrb[0].mxu0
        %350 = vmatprep.mubr.bf16.mxu0 0
        %351 = vmatmul.mubr.bf16.gmra.mrb[0].mxu0 %v264
        %v352 = vpop.f32.mrb[0].mxu0
        %v353 = vadd.f32 0.0, %v352
        %v354 = vpop.f32.mrb[0].mxu0
        %v355 = vpop.f32.mrb[0].mxu0
        %v356 = vadd.f32 0.0, %v355
        %v357 = vpop.f32.mrb[0].mxu0
        %358 = vmatprep.mubr.bf16.mxu0 0
        %359 = vmatmul.mubr.bf16.gmra.mrb[0].mxu0 %v267
        %v360 = vpop.f32.mrb[0].mxu0
        %v361 = vadd.f32 0.0, %v360
        %v362 = vpop.f32.mrb[0].mxu0
        %v363 = vpop.f32.mrb[0].mxu0
        %v364 = vadd.f32 0.0, %v363
        %v365 = vpop.f32.mrb[0].mxu0
        %366 = vmatprep.mubr.bf16.mxu0 0
        %367 = vmatmul.mubr.bf16.gmra.mrb[0].mxu0 %v270
        %v368 = vpop.f32.mrb[0].mxu0
        %v369 = vadd.f32 0.0, %v368
        %v370 = vpop.f32.mrb[0].mxu0
        %v371 = vpop.f32.mrb[0].mxu0
        %v372 = vadd.f32 0.0, %v371
        %v373 = vpop.f32.mrb[0].mxu0
        %374 = vmatprep.mubr.bf16.mxu0 0
        %375 = vmatmul.mubr.bf16.gmra.mrb[0].mxu0 %v273
        %v376 = vpop.f32.mrb[0].mxu0
        %v377 = vadd.f32 0.0, %v376
        %v378 = vpop.f32.mrb[0].mxu0
        %v379 = vpop.f32.mrb[0].mxu0
        %v380 = vadd.f32 0.0, %v379
        %v381 = vpop.f32.mrb[0].mxu0
        %382 = vmatprep.mubr.bf16.mxu0 0
        %383 = vmatmul.mubr.bf16.gmra.mrb[0].mxu0 %v276
        %v384 = vpop.f32.mrb[0].mxu0
        %v385 = vadd.f32 0.0, %v384
        %v386 = vpop.f32.mrb[0].mxu0
        %v387 = vpop.f32.mrb[0].mxu0
        %v388 = vadd.f32 0.0, %v387
        %v389 = vpop.f32.mrb[0].mxu0
        %390 = vdwg.mxu0
        %v391 = vtanh.pop %v313
        %v392 = vtanh.pop %v316
        %v393 = vtanh.pop %v321
        %v394 = vtanh.pop %v324
        %v395 = vtanh.pop %v329
        %v396 = vtanh.pop %v332
        %v397 = vtanh.pop %v337
        %v398 = vtanh.pop %v340
        %v399 = vtanh.pop %v345
        %v400 = vtanh.pop %v348
        %v401 = vtanh.pop %v353
        %v402 = vtanh.pop %v356
        %v403 = vtanh.pop %v361
        %v404 = vtanh.pop %v364
        %v405 = vtanh.pop %v369
        %v406 = vtanh.pop %v372
        %v407 = vtanh.pop %v377
        %v408 = vtanh.pop %v380
        %v409 = vtanh.pop %v385
        %v410 = vtanh.pop %v388
        %v411 = vmul.f32 %v391, 0.5
        %v412 = vmul.f32 %v392, 0.5
        %v413 = vmul.f32 %v393, 0.5
        %v414 = vmul.f32 %v394, 0.5
        %v415 = vmul.f32 %v395, 0.5
        %v416 = vmul.f32 %v396, 0.5
        %v417 = vmul.f32 %v397, 0.5
        %v418 = vmul.f32 %v398, 0.5
        %v419 = vmul.f32 %v399, 0.5
        %v420 = vmul.f32 %v400, 0.5
        %v421 = vmul.f32 %v401, 0.5
        %v422 = vmul.f32 %v402, 0.5
        %v423 = vmul.f32 %v403, 0.5
        %v424 = vmul.f32 %v404, 0.5
        %v425 = vmul.f32 %v405, 0.5
        %v426 = vmul.f32 %v406, 0.5
        %v427 = vmul.f32 %v407, 0.5
        %v428 = vmul.f32 %v408, 0.5
        %v429 = vmul.f32 %v409, 0.5
        %v430 = vmul.f32 %v410, 0.5
        %v431 = vadd.f32 %v411, 0.5
        %v432 = vadd.f32 %v412, 0.5
        %v433 = vadd.f32 %v413, 0.5
        %v434 = vadd.f32 %v414, 0.5
        %v435 = vadd.f32 %v415, 0.5
        %v436 = vadd.f32 %v416, 0.5
        %v437 = vadd.f32 %v417, 0.5
        %v438 = vadd.f32 %v418, 0.5
        %v439 = vadd.f32 %v419, 0.5
        %v440 = vadd.f32 %v420, 0.5
        %v441 = vadd.f32 %v421, 0.5
        %v442 = vadd.f32 %v422, 0.5
        %v443 = vadd.f32 %v423, 0.5
        %v444 = vadd.f32 %v424, 0.5
        %v445 = vadd.f32 %v425, 0.5
        %v446 = vadd.f32 %v426, 0.5
        %v447 = vadd.f32 %v427, 0.5
        %v448 = vadd.f32 %v428, 0.5
        %v449 = vadd.f32 %v429, 0.5
        %v450 = vadd.f32 %v430, 0.5
        %v451 = vpack.c.bf16 %v432, %v431
        %v452 = vpack.c.bf16 %v434, %v433
        %v453 = vpack.c.bf16 %v436, %v435
        %v454 = vpack.c.bf16 %v438, %v437
        %v455 = vpack.c.bf16 %v440, %v439
        %v456 = vpack.c.bf16 %v442, %v441
        %v457 = vpack.c.bf16 %v444, %v443
        %v458 = vpack.c.bf16 %v446, %v445
        %v459 = vpack.c.bf16 %v448, %v447
        %v460 = vpack.c.bf16 %v450, %v449
        %v461 = vld [vmem:[%s2] sm:$0xf]
        %v462 = vld [vmem:[%s2 + $0x4] sm:$0xf]
        %v463 = vld [vmem:[%s2 + $0x8] sm:$0xf]
        %v464 = vld [vmem:[%s2 + $0xc] sm:$0xf]
        %v465 = vld [vmem:[%s2 + $0x10] sm:$0xf]
        %v466 = vld [vmem:[%s2 + $0x14] sm:$0xf]
        %v467 = vld [vmem:[%s2 + $0x18] sm:$0xf]
        %v468 = vld [vmem:[%s2 + $0x1c] sm:$0xf]
        %v469 = vld [vmem:[%s2 + $0x20] sm:$0xf]
        %v470 = vld [vmem:[%s2 + $0x24] sm:$0xf]
        %v471 = vld [vmem:[%s2 + $0x28] sm:$0xf]
        %v472 = vld [vmem:[%s2 + $0x2c] sm:$0xf]
        %v473 = vld [vmem:[%s2 + $0x30] sm:$0xf]
        %v474 = vld [vmem:[%s2 + $0x34] sm:$0xf]
        %v475 = vld [vmem:[%s2 + $0x38] sm:$0xf]
        %v476 = vld [vmem:[%s2 + $0x3c] sm:$0xf]
        %v493 = vunpack.c.l.b16 %v461
        %v494 = vunpack.c.l.b16 %v462
        %v495 = vunpack.c.l.b16 %v463
        %v496 = vunpack.c.l.b16 %v464
        %v497 = vunpack.c.l.b16 %v465
        %v498 = vunpack.c.l.b16 %v466
        %v499 = vunpack.c.l.b16 %v467
        %v500 = vunpack.c.l.b16 %v468
        %v501 = vunpack.c.l.b16 %v469
        %v502 = vunpack.c.l.b16 %v470
        %v503 = vunpack.c.l.b16 %v471
        %v504 = vunpack.c.l.b16 %v472
        %v505 = vunpack.c.l.b16 %v473
        %v506 = vunpack.c.l.b16 %v474
        %v507 = vunpack.c.l.b16 %v475
        %v508 = vunpack.c.l.b16 %v476
        %v509 = vpack.c.b16 %v494, %v493
        %v510 = vpack.c.b16 %v496, %v495
        %v511 = vpack.c.b16 %v498, %v497
        %v512 = vpack.c.b16 %v500, %v499
        %v513 = vpack.c.b16 %v502, %v501
        %v514 = vpack.c.b16 %v504, %v503
        %v515 = vpack.c.b16 %v506, %v505
        %v516 = vpack.c.b16 %v508, %v507
        %525 = vmatprep.subr.bf16.mxu0 0
        %526 = vmatpush1.bf16.msra.mxu0 %v509
        %527 = vmatprep.subr.bf16.mxu0 0
        %528 = vmatpush1.bf16.msra.mxu0 %v510
        %529 = vmatprep.subr.bf16.mxu0 0
        %530 = vmatpush1.bf16.msra.mxu0 %v511
        %531 = vmatprep.subr.bf16.mxu0 0
        %532 = vmatpush1.bf16.msra.mxu0 %v512
        %533 = vmatprep.subr.bf16.mxu0 0
        %534 = vmatpush1.bf16.msra.mxu0 %v513
        %535 = vmatprep.subr.bf16.mxu0 0
        %536 = vmatpush1.bf16.msra.mxu0 %v514
        %537 = vmatprep.subr.bf16.mxu0 0
        %538 = vmatpush1.bf16.msra.mxu0 %v515
        %539 = vmatprep.subr.bf16.mxu0 0
        %540 = vmatpush1.bf16.msra.mxu0 %v516
        %541 = vmatprep.subr.bf16.mxu0 0
        %542 = vmatpush1.bf16.msra.mxu0 0
        %543 = vmatprep.subr.bf16.mxu0 0
        %544 = vmatpush1.bf16.msra.mxu0 0
        %545 = vmatprep.subr.bf16.mxu0 0
        %546 = vmatpush1.bf16.msra.mxu0 0
        %547 = vmatprep.subr.bf16.mxu0 0
        %548 = vmatpush1.bf16.msra.mxu0 0
        %549 = vmatprep.subr.bf16.mxu0 0
        %550 = vmatpush1.bf16.msra.mxu0 0
        %551 = vmatprep.subr.bf16.mxu0 0
        %552 = vmatpush1.bf16.msra.mxu0 0
        %553 = vmatprep.subr.bf16.mxu0 0
        %554 = vmatpush1.bf16.msra.mxu0 0
        %555 = vmatprep.subr.bf16.mxu0 0
        %556 = vmatpush1.bf16.msra.mxu0 0
        %557 = vmatprep.mubr.bf16.mxu0 0
        %558 = vmatmul.mubr.bf16.gmra.mrb[0].mxu0 %v451
        %v559 = vpop.f32.mrb[0].mxu0
        %v560 = vadd.f32 0.0, %v559
        %v561 = vpop.f32.mrb[0].mxu0
        %v562 = vpop.f32.mrb[0].mxu0
        %v563 = vadd.f32 0.0, %v562
        %v564 = vpop.f32.mrb[0].mxu0
        %565 = vmatprep.mubr.bf16.mxu0 0
        %566 = vmatmul.mubr.bf16.gmra.mrb[0].mxu0 %v452
        %v567 = vpop.f32.mrb[0].mxu0
        %v568 = vadd.f32 0.0, %v567
        %v569 = vpop.f32.mrb[0].mxu0
        %v570 = vpop.f32.mrb[0].mxu0
        %v571 = vadd.f32 0.0, %v570
        %v572 = vpop.f32.mrb[0].mxu0
        %573 = vmatprep.mubr.bf16.mxu0 0
        %574 = vmatmul.mubr.bf16.gmra.mrb[0].mxu0 %v453
        %v575 = vpop.f32.mrb[0].mxu0
        %v576 = vadd.f32 0.0, %v575
        %v577 = vpop.f32.mrb[0].mxu0
        %v578 = vpop.f32.mrb[0].mxu0
        %v579 = vadd.f32 0.0, %v578
        %v580 = vpop.f32.mrb[0].mxu0
        %581 = vmatprep.mubr.bf16.mxu0 0
        %582 = vmatmul.mubr.bf16.gmra.mrb[0].mxu0 %v454
        %v583 = vpop.f32.mrb[0].mxu0
        %v584 = vadd.f32 0.0, %v583
        %v585 = vpop.f32.mrb[0].mxu0
        %v586 = vpop.f32.mrb[0].mxu0
        %v587 = vadd.f32 0.0, %v586
        %v588 = vpop.f32.mrb[0].mxu0
        %589 = vmatprep.mubr.bf16.mxu0 0
        %590 = vmatmul.mubr.bf16.gmra.mrb[0].mxu0 %v455
        %v591 = vpop.f32.mrb[0].mxu0
        %v592 = vadd.f32 0.0, %v591
        %v593 = vpop.f32.mrb[0].mxu0
        %v594 = vpop.f32.mrb[0].mxu0
        %v595 = vadd.f32 0.0, %v594
        %v596 = vpop.f32.mrb[0].mxu0
        %597 = vmatprep.mubr.bf16.mxu0 0
        %598 = vmatmul.mubr.bf16.gmra.mrb[0].mxu0 %v456
        %v599 = vpop.f32.mrb[0].mxu0
        %v600 = vadd.f32 0.0, %v599
        %v601 = vpop.f32.mrb[0].mxu0
        %v602 = vpop.f32.mrb[0].mxu0
        %v603 = vadd.f32 0.0, %v602
        %v604 = vpop.f32.mrb[0].mxu0
        %605 = vmatprep.mubr.bf16.mxu0 0
        %606 = vmatmul.mubr.bf16.gmra.mrb[0].mxu0 %v457
        %v607 = vpop.f32.mrb[0].mxu0
        %v608 = vadd.f32 0.0, %v607
        %v609 = vpop.f32.mrb[0].mxu0
        %v610 = vpop.f32.mrb[0].mxu0
        %v611 = vadd.f32 0.0, %v610
        %v612 = vpop.f32.mrb[0].mxu0
        %613 = vmatprep.mubr.bf16.mxu0 0
        %614 = vmatmul.mubr.bf16.gmra.mrb[0].mxu0 %v458
        %v615 = vpop.f32.mrb[0].mxu0
        %v616 = vadd.f32 0.0, %v615
        %v617 = vpop.f32.mrb[0].mxu0
        %v618 = vpop.f32.mrb[0].mxu0
        %v619 = vadd.f32 0.0, %v618
        %v620 = vpop.f32.mrb[0].mxu0
        %621 = vmatprep.mubr.bf16.mxu0 0
        %622 = vmatmul.mubr.bf16.gmra.mrb[0].mxu0 %v459
        %v623 = vpop.f32.mrb[0].mxu0
        %v624 = vadd.f32 0.0, %v623
        %v625 = vpop.f32.mrb[0].mxu0
        %v626 = vpop.f32.mrb[0].mxu0
        %v627 = vadd.f32 0.0, %v626
        %v628 = vpop.f32.mrb[0].mxu0
        %629 = vmatprep.mubr.bf16.mxu0 0
        %630 = vmatmul.mubr.bf16.gmra.mrb[0].mxu0 %v460
        %v631 = vpop.f32.mrb[0].mxu0
        %v632 = vadd.f32 0.0, %v631
        %v633 = vpop.f32.mrb[0].mxu0
        %v634 = vpop.f32.mrb[0].mxu0
        %v635 = vadd.f32 0.0, %v634
        %v636 = vpop.f32.mrb[0].mxu0
        %637 = vdwg.mxu0
        %v638 = vtanh.pop %v560
        %v639 = vtanh.pop %v563
        %v640 = vtanh.pop %v568
        %v641 = vtanh.pop %v571
        %v642 = vtanh.pop %v576
        %v643 = vtanh.pop %v579
        %v644 = vtanh.pop %v584
        %v645 = vtanh.pop %v587
        %v646 = vtanh.pop %v592
        %v647 = vtanh.pop %v595
        %v648 = vtanh.pop %v600
        %v649 = vtanh.pop %v603
        %v650 = vtanh.pop %v608
        %v651 = vtanh.pop %v611
        %v652 = vtanh.pop %v616
        %v653 = vtanh.pop %v619
        %v654 = vtanh.pop %v624
        %v655 = vtanh.pop %v627
        %v656 = vtanh.pop %v632
        %v657 = vtanh.pop %v635
        %v658 = vmul.f32 %v638, 0.5
        %v659 = vmul.f32 %v639, 0.5
        %v660 = vmul.f32 %v640, 0.5
        %v661 = vmul.f32 %v641, 0.5
        %v662 = vmul.f32 %v642, 0.5
        %v663 = vmul.f32 %v643, 0.5
        %v664 = vmul.f32 %v644, 0.5
        %v665 = vmul.f32 %v645, 0.5
        %v666 = vmul.f32 %v646, 0.5
        %v667 = vmul.f32 %v647, 0.5
        %v668 = vmul.f32 %v648, 0.5
        %v669 = vmul.f32 %v649, 0.5
        %v670 = vmul.f32 %v650, 0.5
        %v671 = vmul.f32 %v651, 0.5
        %v672 = vmul.f32 %v652, 0.5
        %v673 = vmul.f32 %v653, 0.5
        %v674 = vmul.f32 %v654, 0.5
        %v675 = vmul.f32 %v655, 0.5
        %v676 = vmul.f32 %v656, 0.5
        %v677 = vmul.f32 %v657, 0.5
        %v678 = vadd.f32 %v658, 0.5
        %v679 = vadd.f32 %v659, 0.5
        %v680 = vadd.f32 %v660, 0.5
        %v681 = vadd.f32 %v661, 0.5
        %v682 = vadd.f32 %v662, 0.5
        %v683 = vadd.f32 %v663, 0.5
        %v684 = vadd.f32 %v664, 0.5
        %v685 = vadd.f32 %v665, 0.5
        %v686 = vadd.f32 %v666, 0.5
        %v687 = vadd.f32 %v667, 0.5
        %v688 = vadd.f32 %v668, 0.5
        %v689 = vadd.f32 %v669, 0.5
        %v690 = vadd.f32 %v670, 0.5
        %v691 = vadd.f32 %v671, 0.5
        %v692 = vadd.f32 %v672, 0.5
        %v693 = vadd.f32 %v673, 0.5
        %v694 = vadd.f32 %v674, 0.5
        %v695 = vadd.f32 %v675, 0.5
        %v696 = vadd.f32 %v676, 0.5
        %v697 = vadd.f32 %v677, 0.5
        %v698 = vpack.c.bf16 %v679, %v678
        %v699 = vpack.c.bf16 %v681, %v680
        %v700 = vpack.c.bf16 %v683, %v682
        %v701 = vpack.c.bf16 %v685, %v684
        %v702 = vpack.c.bf16 %v687, %v686
        %v703 = vpack.c.bf16 %v689, %v688
        %v704 = vpack.c.bf16 %v691, %v690
        %v705 = vpack.c.bf16 %v693, %v692
        %v706 = vpack.c.bf16 %v695, %v694
        %v707 = vpack.c.bf16 %v697, %v696
        %v718 = vunpack.c.l.b16 %v698
        %v719 = vunpack.c.h.b16 %v698
        %v720 = vunpack.c.l.b16 %v699
        %v721 = vunpack.c.h.b16 %v699
        %v722 = vunpack.c.l.b16 %v700
        %v723 = vunpack.c.h.b16 %v700
        %v724 = vunpack.c.l.b16 %v701
        %v725 = vunpack.c.h.b16 %v701
        %v726 = vunpack.c.l.b16 %v702
        %v727 = vunpack.c.h.b16 %v702
        %v728 = vunpack.c.l.b16 %v703
        %v729 = vunpack.c.h.b16 %v703
        %v730 = vunpack.c.l.b16 %v704
        %v731 = vunpack.c.h.b16 %v704
        %v732 = vunpack.c.l.b16 %v705
        %v733 = vunpack.c.h.b16 %v705
        %v734 = vunpack.c.l.b16 %v706
        %v735 = vunpack.c.h.b16 %v706
        %v736 = vunpack.c.l.b16 %v707
        %v737 = vunpack.c.h.b16 %v707
        %v738 = vpack.c.b16 %v718, %v718
        %v739 = vpack.c.b16 %v719, %v719
        %v740 = vpack.c.b16 %v720, %v720
        %v741 = vpack.c.b16 %v721, %v721
        %v742 = vpack.c.b16 %v722, %v722
        %v743 = vpack.c.b16 %v723, %v723
        %v744 = vpack.c.b16 %v724, %v724
        %v745 = vpack.c.b16 %v725, %v725
        %v746 = vpack.c.b16 %v726, %v726
        %v747 = vpack.c.b16 %v727, %v727
        %v748 = vpack.c.b16 %v728, %v728
        %v749 = vpack.c.b16 %v729, %v729
        %v750 = vpack.c.b16 %v730, %v730
        %v751 = vpack.c.b16 %v731, %v731
        %v752 = vpack.c.b16 %v732, %v732
        %v753 = vpack.c.b16 %v733, %v733
        %v754 = vpack.c.b16 %v734, %v734
        %v755 = vpack.c.b16 %v735, %v735
        %v756 = vpack.c.b16 %v736, %v736
        %v757 = vpack.c.b16 %v737, %v737
        %778 = vst [vmem:[%s172] sm:$0xf] %v738
        %779 = vst [vmem:[%s172 + $0x4] sm:$0xf] %v739
        %780 = vst [vmem:[%s172 + $0x8] sm:$0xf] %v740
        %781 = vst [vmem:[%s172 + $0xc] sm:$0xf] %v741
        %782 = vst [vmem:[%s172 + $0x10] sm:$0xf] %v742
        %783 = vst [vmem:[%s172 + $0x14] sm:$0xf] %v743
        %784 = vst [vmem:[%s172 + $0x18] sm:$0xf] %v744
        %785 = vst [vmem:[%s172 + $0x1c] sm:$0xf] %v745
        %786 = vst [vmem:[%s172 + $0x20] sm:$0xf] %v746
        %787 = vst [vmem:[%s172 + $0x24] sm:$0xf] %v747
        %788 = vst [vmem:[%s172 + $0x28] sm:$0xf] %v748
        %789 = vst [vmem:[%s172 + $0x2c] sm:$0xf] %v749
        %790 = vst [vmem:[%s172 + $0x30] sm:$0xf] %v750
        %791 = vst [vmem:[%s172 + $0x34] sm:$0xf] %v751
        %792 = vst [vmem:[%s172 + $0x38] sm:$0xf] %v752
        %793 = vst [vmem:[%s172 + $0x3c] sm:$0xf] %v753
        %794 = vst [vmem:[%s172 + $0x40] sm:$0xf] %v754
        %795 = vst [vmem:[%s172 + $0x44] sm:$0xf] %v755
        %796 = vst [vmem:[%s172 + $0x48] sm:$0xf] %v756
        %797 = vst [vmem:[%s172 + $0x4c] sm:$0xf] %v757
        %s798 = sand.u32 %s90, 1
        %s799 = sand.u32 %s90, 1
        %s800 = smul.addr %s799, 80
        %s801 = scalar_lea.vmem [#allocation2], %s800
        // Predicated region
        $region33: #{mlp_forward.1} parent=31 // pred_check
          %p802 = pneg %p100
        $region34: #{mlp_forward.1} parent=31 // pred_check_branch
          %804 = sbr.rel (%p802) target = $region36
        $region35: #{mlp_forward.1} parent=31 // pred_region
          %s805 = smul.u32 20, %s14
          %s806 = ssub.s32 38, %s805
          %p807 = scmp.lt.s32.totalorder %s806, 20
          %s808 = scalar_select %p807, %s806, 20
          %s809 = smul.u32 64, %s808
          %p810 = scmp.ne.s32.totalorder 0, %s809
          %s811 = smul.addr %s805, 4
          %s812 = scalar_lea.vmem %s3, %s811
          // Predicated region
          $region37: #{mlp_forward.1} parent=35 // pred_check
            %p813 = pneg %p810
          $region38: #{mlp_forward.1} parent=35 // pred_check_branch
            %815 = sbr.rel (%p813) target = $region40
          $region39: #{mlp_forward.1} parent=35 // pred_region
            // Predicated region
            $region41: #{mlp_forward.1} parent=39 // pred_check
              _
            $region42: #{mlp_forward.1} parent=39 // pred_check_branch
              %817 = sbr.rel target = $region44
            $region43: #{mlp_forward.1} parent=39 // pred_region
              // Predicated region
              $region63: #{mlp_forward.1} parent=43 // pred_check
                _
              $region64: #{mlp_forward.1} parent=43 // pred_check_branch
                %905 = sbr.rel (0) target = $region66
              $region65: #{mlp_forward.1} parent=43 // pred_region
                %s907 = sdiv.u32.pop %s808, 20
                %s908 = srem.u32.pop %s808, 20
                // While loop
                $region67: #{mlp_forward.1} parent=65 // loop_pre_header
                  _
                $region68: #{mlp_forward.1} parent=65 // loop_header
                  %s910 = sphi 0, %s912
                  %p911 = scmp.ge.s32.totalorder %s910, %s907
                  %s915 = sphi 0, %s960
                  %s916 = sphi %s801, %s963
                  %s917 = sphi %s812, %s964
                $region69: #{mlp_forward.1} parent=65 // loop_header_branch
                  %914 = sbr.rel (%p911) target = $region73
                $region70: #{mlp_forward.1} parent=65 // loop_body
                  %v918 = vld [vmem:[%s916] sm:$0xf]
                  %919 = vst [vmem:[%s917] sm:$0xf] %v918
                  %v920 = vld [vmem:[%s916 + $0x4] sm:$0xf]
                  %921 = vst [vmem:[%s917 + $0x4] sm:$0xf] %v920
                  %v922 = vld [vmem:[%s916 + $0x8] sm:$0xf]
                  %923 = vst [vmem:[%s917 + $0x8] sm:$0xf] %v922
                  %v924 = vld [vmem:[%s916 + $0xc] sm:$0xf]
                  %925 = vst [vmem:[%s917 + $0xc] sm:$0xf] %v924
                  %v926 = vld [vmem:[%s916 + $0x10] sm:$0xf]
                  %927 = vst [vmem:[%s917 + $0x10] sm:$0xf] %v926
                  %v928 = vld [vmem:[%s916 + $0x14] sm:$0xf]
                  %929 = vst [vmem:[%s917 + $0x14] sm:$0xf] %v928
                  %v930 = vld [vmem:[%s916 + $0x18] sm:$0xf]
                  %931 = vst [vmem:[%s917 + $0x18] sm:$0xf] %v930
                  %v932 = vld [vmem:[%s916 + $0x1c] sm:$0xf]
                  %933 = vst [vmem:[%s917 + $0x1c] sm:$0xf] %v932
                  %v934 = vld [vmem:[%s916 + $0x20] sm:$0xf]
                  %935 = vst [vmem:[%s917 + $0x20] sm:$0xf] %v934
                  %v936 = vld [vmem:[%s916 + $0x24] sm:$0xf]
                  %937 = vst [vmem:[%s917 + $0x24] sm:$0xf] %v936
                  %v938 = vld [vmem:[%s916 + $0x28] sm:$0xf]
                  %939 = vst [vmem:[%s917 + $0x28] sm:$0xf] %v938
                  %v940 = vld [vmem:[%s916 + $0x2c] sm:$0xf]
                  %941 = vst [vmem:[%s917 + $0x2c] sm:$0xf] %v940
                  %v942 = vld [vmem:[%s916 + $0x30] sm:$0xf]
                  %943 = vst [vmem:[%s917 + $0x30] sm:$0xf] %v942
                  %v944 = vld [vmem:[%s916 + $0x34] sm:$0xf]
                  %945 = vst [vmem:[%s917 + $0x34] sm:$0xf] %v944
                  %v946 = vld [vmem:[%s916 + $0x38] sm:$0xf]
                  %947 = vst [vmem:[%s917 + $0x38] sm:$0xf] %v946
                  %v948 = vld [vmem:[%s916 + $0x3c] sm:$0xf]
                  %949 = vst [vmem:[%s917 + $0x3c] sm:$0xf] %v948
                  %v950 = vld [vmem:[%s916 + $0x40] sm:$0xf]
                  %951 = vst [vmem:[%s917 + $0x40] sm:$0xf] %v950
                  %v952 = vld [vmem:[%s916 + $0x44] sm:$0xf]
                  %953 = vst [vmem:[%s917 + $0x44] sm:$0xf] %v952
                  %v954 = vld [vmem:[%s916 + $0x48] sm:$0xf]
                  %955 = vst [vmem:[%s917 + $0x48] sm:$0xf] %v954
                  %v956 = vld [vmem:[%s916 + $0x4c] sm:$0xf]
                  %957 = vst [vmem:[%s917 + $0x4c] sm:$0xf] %v956
                  %s958 = sadd.s32 1, %s915
                  %p959 = scmp.ge.s32.totalorder %s958, %s907
                  %s960 = scalar_select %p959, 0, %s958
                  %s961 = smul.u32 %s960, 80
                  %s962 = smul.u32 %s960, 80
                  %s963 = scalar_lea.vmem %s801, %s961 [#allocation2]
                  %s964 = scalar_lea.vmem %s812, %s962
                $region71: #{mlp_forward.1} parent=65 // loop_footer
                  %s912 = sadd.s32 %s910, 1
                $region72: #{mlp_forward.1} parent=65 // loop_footer_branch
                  %909 = sbr.rel target = $region68
                $region73: #{mlp_forward.1} parent=65 // loop_exit
                  _
                %s965 = sdiv.u32.pop %s808, 20
                %s966 = srem.u32.pop %s808, 20
                %s967 = smul.u32 %s965, 20
                %s968 = smul.u32 4, %s967
                %s969 = scalar_lea.vmem %s801, %s968 [#allocation2]
                %s970 = smul.u32 4, %s967
                %s971 = scalar_lea.vmem %s812, %s970
                // While loop
                $region74: #{mlp_forward.1} parent=65 // loop_pre_header
                  _
                $region75: #{mlp_forward.1} parent=65 // loop_header
                  %s973 = sphi 0, %s975
                  %p974 = scmp.ge.s32.totalorder %s973, %s966
                  %s978 = sphi 0, %s985
                  %s979 = sphi %s969, %s988
                  %s980 = sphi %s971, %s989
                $region76: #{mlp_forward.1} parent=65 // loop_header_branch
                  %977 = sbr.rel (%p974) target = $region80
                $region77: #{mlp_forward.1} parent=65 // loop_body
                  %v981 = vld [vmem:[%s979] sm:$0xf]
                  %982 = vst [vmem:[%s980] sm:$0xf] %v981
                  %s983 = sadd.s32 1, %s978
                  %p984 = scmp.ge.s32.totalorder %s983, %s966
                  %s985 = scalar_select %p984, 0, %s983
                  %s986 = smul.u32 %s985, 4
                  %s987 = smul.u32 %s985, 4
                  %s988 = scalar_lea.vmem %s969, %s986 [#allocation2]
                  %s989 = scalar_lea.vmem %s971, %s987
                $region78: #{mlp_forward.1} parent=65 // loop_footer
                  %s975 = sadd.s32 %s973, 1
                $region79: #{mlp_forward.1} parent=65 // loop_footer_branch
                  %972 = sbr.rel target = $region75
                $region80: #{mlp_forward.1} parent=65 // loop_exit
                  _
              $region66: #{mlp_forward.1} parent=43 // pred_fallthru
                _
            $region44: #{mlp_forward.1} parent=39 // pred_fallthru
              _
            // Predicated region
            $region45: #{mlp_forward.1} parent=39 // pred_check
              _
            $region46: #{mlp_forward.1} parent=39 // pred_check_branch
              %819 = sbr.rel (0) target = $region48
            $region47: #{mlp_forward.1} parent=39 // pred_region
              %s821 = sdiv.u32.pop %s808, 20
              %s822 = srem.u32.pop %s808, 20
              // While loop
              $region49: #{mlp_forward.1} parent=47 // loop_pre_header
                _
              $region50: #{mlp_forward.1} parent=47 // loop_header
                %s824 = sphi 0, %s826
                %p825 = scmp.ge.s32.totalorder %s824, %s821
                %s829 = sphi 0, %s874
                %s830 = sphi %s801, %s877
                %s831 = sphi %s812, %s878
              $region51: #{mlp_forward.1} parent=47 // loop_header_branch
                %828 = sbr.rel (%p825) target = $region55
              $region52: #{mlp_forward.1} parent=47 // loop_body
                %v832 = vld [vmem:[%s830] sm:$0xf]
                %833 = vst [vmem:[%s831] sm:$0xf] %v832
                %v834 = vld [vmem:[%s830 + $0x4] sm:$0xf]
                %835 = vst [vmem:[%s831 + $0x4] sm:$0xf] %v834
                %v836 = vld [vmem:[%s830 + $0x8] sm:$0xf]
                %837 = vst [vmem:[%s831 + $0x8] sm:$0xf] %v836
                %v838 = vld [vmem:[%s830 + $0xc] sm:$0xf]
                %839 = vst [vmem:[%s831 + $0xc] sm:$0xf] %v838
                %v840 = vld [vmem:[%s830 + $0x10] sm:$0xf]
                %841 = vst [vmem:[%s831 + $0x10] sm:$0xf] %v840
                %v842 = vld [vmem:[%s830 + $0x14] sm:$0xf]
                %843 = vst [vmem:[%s831 + $0x14] sm:$0xf] %v842
                %v844 = vld [vmem:[%s830 + $0x18] sm:$0xf]
                %845 = vst [vmem:[%s831 + $0x18] sm:$0xf] %v844
                %v846 = vld [vmem:[%s830 + $0x1c] sm:$0xf]
                %847 = vst [vmem:[%s831 + $0x1c] sm:$0xf] %v846
                %v848 = vld [vmem:[%s830 + $0x20] sm:$0xf]
                %849 = vst [vmem:[%s831 + $0x20] sm:$0xf] %v848
                %v850 = vld [vmem:[%s830 + $0x24] sm:$0xf]
                %851 = vst [vmem:[%s831 + $0x24] sm:$0xf] %v850
                %v852 = vld [vmem:[%s830 + $0x28] sm:$0xf]
                %853 = vst [vmem:[%s831 + $0x28] sm:$0xf] %v852
                %v854 = vld [vmem:[%s830 + $0x2c] sm:$0xf]
                %855 = vst [vmem:[%s831 + $0x2c] sm:$0xf] %v854
                %v856 = vld [vmem:[%s830 + $0x30] sm:$0xf]
                %857 = vst [vmem:[%s831 + $0x30] sm:$0xf] %v856
                %v858 = vld [vmem:[%s830 + $0x34] sm:$0xf]
                %859 = vst [vmem:[%s831 + $0x34] sm:$0xf] %v858
                %v860 = vld [vmem:[%s830 + $0x38] sm:$0xf]
                %861 = vst [vmem:[%s831 + $0x38] sm:$0xf] %v860
                %v862 = vld [vmem:[%s830 + $0x3c] sm:$0xf]
                %863 = vst [vmem:[%s831 + $0x3c] sm:$0xf] %v862
                %v864 = vld [vmem:[%s830 + $0x40] sm:$0xf]
                %865 = vst [vmem:[%s831 + $0x40] sm:$0xf] %v864
                %v866 = vld [vmem:[%s830 + $0x44] sm:$0xf]
                %867 = vst [vmem:[%s831 + $0x44] sm:$0xf] %v866
                %v868 = vld [vmem:[%s830 + $0x48] sm:$0xf]
                %869 = vst [vmem:[%s831 + $0x48] sm:$0xf] %v868
                %v870 = vld [vmem:[%s830 + $0x4c] sm:$0xf]
                %871 = vst [vmem:[%s831 + $0x4c] sm:$0xf] %v870
                %s872 = sadd.s32 1, %s829
                %p873 = scmp.ge.s32.totalorder %s872, %s821
                %s874 = scalar_select %p873, 0, %s872
                %s875 = smul.u32 %s874, 80
                %s876 = smul.u32 %s874, 80
                %s877 = scalar_lea.vmem %s801, %s875 [#allocation2]
                %s878 = scalar_lea.vmem %s812, %s876
              $region53: #{mlp_forward.1} parent=47 // loop_footer
                %s826 = sadd.s32 %s824, 1
              $region54: #{mlp_forward.1} parent=47 // loop_footer_branch
                %823 = sbr.rel target = $region50
              $region55: #{mlp_forward.1} parent=47 // loop_exit
                _
              %s879 = sdiv.u32.pop %s808, 20
              %s880 = srem.u32.pop %s808, 20
              %s881 = smul.u32 %s879, 20
              %s882 = smul.u32 4, %s881
              %s883 = scalar_lea.vmem %s801, %s882 [#allocation2]
              %s884 = smul.u32 4, %s881
              %s885 = scalar_lea.vmem %s812, %s884
              // While loop
              $region56: #{mlp_forward.1} parent=47 // loop_pre_header
                _
              $region57: #{mlp_forward.1} parent=47 // loop_header
                %s887 = sphi 0, %s889
                %p888 = scmp.ge.s32.totalorder %s887, %s880
                %s892 = sphi 0, %s899
                %s893 = sphi %s883, %s902
                %s894 = sphi %s885, %s903
              $region58: #{mlp_forward.1} parent=47 // loop_header_branch
                %891 = sbr.rel (%p888) target = $region62
              $region59: #{mlp_forward.1} parent=47 // loop_body
                %v895 = vld [vmem:[%s893] sm:$0xf]
                %896 = vst [vmem:[%s894] sm:$0xf] %v895
                %s897 = sadd.s32 1, %s892
                %p898 = scmp.ge.s32.totalorder %s897, %s880
                %s899 = scalar_select %p898, 0, %s897
                %s900 = smul.u32 %s899, 4
                %s901 = smul.u32 %s899, 4
                %s902 = scalar_lea.vmem %s883, %s900 [#allocation2]
                %s903 = scalar_lea.vmem %s885, %s901
              $region60: #{mlp_forward.1} parent=47 // loop_footer
                %s889 = sadd.s32 %s887, 1
              $region61: #{mlp_forward.1} parent=47 // loop_footer_branch
                %886 = sbr.rel target = $region57
              $region62: #{mlp_forward.1} parent=47 // loop_exit
                _
            $region48: #{mlp_forward.1} parent=39 // pred_fallthru
              _
          $region40: #{mlp_forward.1} parent=35 // pred_fallthru
            _
          %990 = vnop
        $region36: #{mlp_forward.1} parent=31 // pred_fallthru
          _
      $region32: #{mlp_forward.1} parent=5 // pred_fallthru
        _
      %p991 = scmp.le.s32.totalorder 2, %s9
      // Predicated region
      $region81: #{mlp_forward.1} parent=5 // pred_check
        %p992 = pneg %p991
      $region82: #{mlp_forward.1} parent=5 // pred_check_branch
        %994 = sbr.rel (%p992) target = $region84
      $region83: #{mlp_forward.1} parent=5 // pred_region
        %s995 = ssub.s32 %s9, 2
        // Predicated region
        $region85: #{mlp_forward.1} parent=83 // pred_check
          %p996 = pneg %p106
        $region86: #{mlp_forward.1} parent=83 // pred_check_branch
          %998 = sbr.rel (%p996) target = $region88
        $region87: #{mlp_forward.1} parent=83 // pred_region
          %s999 = sand.u32 %s91, 1
          %s1000 = sand.u32 %s91, 1
          %s1001 = smul.addr %s1000, 80
          %s1002 = scalar_lea.vmem [#allocation2], %s1001
        $region88: #{mlp_forward.1} parent=83 // pred_fallthru
          _
      $region84: #{mlp_forward.1} parent=5 // pred_fallthru
        _
    $region6: #{mlp_forward.1} parent=1 // loop_footer
      %s13 = sadd.s32 1, %s9
    $region7: #{mlp_forward.1} parent=1 // loop_footer_branch
      %8 = sbr.rel target = $region3
    $region8: #{mlp_forward.1} parent=1 // loop_exit
      _

</llo_original>
